<compile_context>
chip_gen: v7x
topology: tpu7x:2x2x1
jax: 0.10.0
libtpu: 0.0.40
codegen_flags: <defaults>
</compile_context>

<pallas_src>
import functools

import jax
import jax.numpy as jnp
from jax.experimental import pallas as pl
from jax.experimental.pallas import tpu as pltpu

H = 128  # hidden width of the shared MLP (fixed by the PyTorch module)


def actor_critic_kernel(x_ref, w1_ref, w2_ref, wh_ref, b_ref,
                        pol_ref, val_ref, *, action_dim):
    # Consolidated f32 constants: [1, 4*H] = [b1 | b2 | b_heads | softmax_mask]
    b1 = b_ref[:, 0:H]
    b2 = b_ref[:, H:2 * H]
    bh = b_ref[:, 2 * H:3 * H]
    smask = b_ref[:, 3 * H:4 * H]        # 0 in policy cols, -1e30 elsewhere

    # shared_layer1 + relu  (bf16 MXU operands, f32 accumulate)
    x = x_ref[...].astype(jnp.bfloat16)                               # [TB, D_in]
    h1 = jnp.dot(x, w1_ref[...], preferred_element_type=jnp.float32) + b1
    h1 = jnp.maximum(h1, 0.0)                                         # [TB, 128] f32

    # shared_layer2 + relu
    h2 = jnp.dot(h1.astype(jnp.bfloat16), w2_ref[...],
                 preferred_element_type=jnp.float32) + b2
    h2 = jnp.maximum(h2, 0.0)                                         # [TB, 128] f32

    # fused policy+value head: cols [0:A] = policy logits, col A = value,
    # cols [A+1:128] = zero padding (weights and bias are zero there).
    logits = jnp.dot(h2.astype(jnp.bfloat16), wh_ref[...],
                     preferred_element_type=jnp.float32) + bh         # [TB, 128] f32

    # value: column `action_dim` of the fused head, kept in f32.
    val_ref[...] = logits[:, action_dim:action_dim + 1]

    # masked softmax over the first `action_dim` columns (exact normalization).
    masked = logits + smask              # pad/value cols -> ~-1e30
    m = jnp.max(masked, axis=-1, keepdims=True)
    e = jnp.exp(masked - m)              # 0 in pad/value cols
    denom = jnp.sum(e, axis=-1, keepdims=True)
    pol_ref[...] = (e / denom).astype(pol_ref.dtype)  # bf16 lane-dense slab


def prepare_params(params, action_dim):
    """One-time conversion from PyTorch [out,in] layout to kernel layout.

    Call this OUTSIDE the per-step path; the forward pass does no transposes,
    casts to bf16, or mask construction.
    """
    assert action_dim <= H - 1, "fused head requires action_dim <= 127"

    w1 = params["w1"].T.astype(jnp.bfloat16)          # [input_dim, H]
    w2 = params["w2"].T.astype(jnp.bfloat16)          # [H, H]
    wp = params["policy_w"].T                         # [H, A] f32
    wv = params["value_w"].T                          # [H, 1] f32

    # fused, zero-padded head weight [H, 128]: [:, :A] = policy, [:, A] = value
    w_heads = jnp.zeros((H, H), jnp.float32)
    w_heads = w_heads.at[:, :action_dim].set(wp)
    w_heads = w_heads.at[:, action_dim:action_dim + 1].set(wv)
    w_heads = w_heads.astype(jnp.bfloat16)

    b_heads = jnp.zeros((H,), jnp.float32)
    b_heads = b_heads.at[:action_dim].set(params["policy_b"])
    b_heads = b_heads.at[action_dim].set(params["value_b"][0])

    # additive softmax mask: 0 for policy columns, -1e30 for value/pad columns
    col = jnp.arange(H)
    smask = jnp.where(col < action_dim, 0.0, -1e30).astype(jnp.float32)

    biases = jnp.concatenate(
        [params["b1"], params["b2"], b_heads, smask]).reshape(1, 4 * H)  # [1, 512] f32

    return {"w1": w1, "w2": w2, "w_heads": w_heads, "biases": biases}


def _round_up(v, m):
    return ((v + m - 1) // m) * m


def actor_critic_forward(x, kparams, action_dim):
    """x: [B, input_dim] f32. kparams: output of prepare_params().

    Returns (policy_probs [B, A] f32, value [B, 1] f32).
    """
    B, input_dim = x.shape

    # Pad the batch only when it is not already a multiple of 16 (bf16 output
    # sublane alignment); the common aligned case does no per-call copy.
    B16 = _round_up(B, 16)
    if B16 != B:
        x = jnp.pad(x, ((0, B16 - B), (0, 0)))

    # Batch tile: large enough to amortize the ~0.35us per-grid-step overhead,
    # but never more than half the (padded) batch once B >= 32 so the
    # "parallel" axis can split across v7x's two TensorCores.  Footprint at
    # TB=2048 is ~2.3 MiB double-buffered -- far under every scoped-VMEM limit.
    TB = min(2048, max(16, _round_up(pl.cdiv(B16, 2), 16)))
    TB = min(TB, B16)
    grid = (pl.cdiv(B16, TB),)

    cost = pl.CostEstimate(
        flops=2 * B16 * (input_dim * H + 2 * H * H),
        transcendentals=B16 * H,                       # exp over all 128 columns
        bytes_accessed=(4 * B16 * input_dim            # x (f32)
                        + 2 * (input_dim * H + 2 * H * H)  # bf16 weights
                        + 4 * 4 * H                    # consolidated biases/mask
                        + 2 * B16 * H                  # bf16 policy slab
                        + 4 * B16),                    # f32 value column
    )

    pol, val = pl.pallas_call(
        functools.partial(actor_critic_kernel, action_dim=action_dim),
        out_shape=(jax.ShapeDtypeStruct((B16, H), jnp.bfloat16),
                   jax.ShapeDtypeStruct((B16, 1), jnp.float32)),
        grid=grid,
        in_specs=[
            pl.BlockSpec((TB, input_dim), lambda i: (i, 0)),   # x: tiled over batch
            pl.BlockSpec((input_dim, H), lambda i: (0, 0)),    # w1: VMEM-resident
            pl.BlockSpec((H, H), lambda i: (0, 0)),            # w2
            pl.BlockSpec((H, H), lambda i: (0, 0)),            # fused head weight
            pl.BlockSpec((1, 4 * H), lambda i: (0, 0)),        # biases + softmax mask
        ],
        out_specs=(pl.BlockSpec((TB, H), lambda i: (i, 0)),    # bf16 policy probs
                   pl.BlockSpec((TB, 1), lambda i: (i, 0))),   # f32 value
        compiler_params=pltpu.CompilerParams(
            dimension_semantics=("parallel",)),
        cost_estimate=cost,
    )(x, kparams["w1"], kparams["w2"], kparams["w_heads"], kparams["biases"])

    policy = pol[:B, :action_dim].astype(jnp.float32)
    value = val[:B, :]
    return policy, value


def init_params(key, input_dim, action_dim):
    """Deterministic init mimicking PyTorch nn.Linear default U(-1/sqrt(fan_in), ...)."""
    ks = jax.random.split(key, 8)

    def lin(kw, kb, fan_in, fan_out):
        bound = 1.0 / jnp.sqrt(fan_in)
        w = jax.random.uniform(kw, (fan_out, fan_in), jnp.float32, -bound, bound)
        b = jax.random.uniform(kb, (fan_out,), jnp.float32, -bound, bound)
        return w, b

    w1, b1 = lin(ks[0], ks[1], input_dim, H)
    w2, b2 = lin(ks[2], ks[3], H, H)
    wp, bp = lin(ks[4], ks[5], H, action_dim)
    wv, bv = lin(ks[6], ks[7], H, 1)
    return {"w1": w1, "b1": b1, "w2": w2, "b2": b2,
            "policy_w": wp, "policy_b": bp, "value_w": wv, "value_b": bv}


def reference_forward(x, params):
    """Pure-JAX f32 reference matching the PyTorch module."""
    h1 = jnp.maximum(x @ params["w1"].T + params["b1"], 0.0)
    h2 = jnp.maximum(h1 @ params["w2"].T + params["b2"], 0.0)
    logits = h2 @ params["policy_w"].T + params["policy_b"]
    policy = jax.nn.softmax(logits, axis=-1)
    value = h2 @ params["value_w"].T + params["value_b"]
    return policy, value


if __name__ == "__main__":
    key = jax.random.PRNGKey(0)
    k_x, k_p = jax.random.split(key)

    B, input_dim, action_dim = 16, 16, 6
    x = jax.random.normal(k_x, (B, input_dim), jnp.float32)
    params = init_params(k_p, input_dim, action_dim)

    # One-time layout conversion / bf16 cast (hoisted out of the per-call path).
    kparams = prepare_params(params, action_dim)

    policy, value = actor_critic_forward(x, kparams, action_dim)
    jax.block_until_ready((policy, value))

    # Shapes match the PyTorch module; softmax rows sum to 1 (exact divide,
    # tolerance only for the bf16 output quantization).
    assert policy.shape == (B, action_dim)
    assert value.shape == (B, 1)
    assert jnp.allclose(jnp.sum(policy, axis=-1), 1.0, atol=1e-2)

    # Compare against the pure-f32 reference (bf16 MXU operands + bf16 policy
    # output -> loosened tolerances).
    ref_policy, ref_value = reference_forward(x, params)
    assert jnp.allclose(policy, ref_policy, atol=3e-2)
    assert jnp.allclose(value, ref_value, atol=3e-2)

    print("KERNEL_OK")
</pallas_src>

<mosaic_0001>
module attributes {stable_mosaic.version = 11 : i64} {
  func.func @actor_critic_kernel(%arg0: i32, %arg1: memref<16x16xf32, #tpu.memory_space<vmem>>, %arg2: memref<16x128xbf16, #tpu.memory_space<vmem>>, %arg3: memref<128x128xbf16, #tpu.memory_space<vmem>>, %arg4: memref<128x128xbf16, #tpu.memory_space<vmem>>, %arg5: memref<1x512xf32, #tpu.memory_space<vmem>>, %arg6: memref<16x128xbf16, #tpu.memory_space<vmem>>, %arg7: memref<16x1xf32, #tpu.memory_space<vmem>>) attributes {dimension_semantics = [#tpu.dimension_semantics<parallel>], iteration_bounds = array<i64: 1>, scalar_prefetch = 0 : i64, scratch_operands = 0 : i64, tpu.core_type = #tpu.core_type<tc>, window_params = [{transform_indices = @transform_0, window_bounds = array<i64: 16, 16>}, {pipeline_mode = #tpu.pipeline_mode<synchronous>, transform_indices = @transform_1, window_bounds = array<i64: 16, 128>}, {pipeline_mode = #tpu.pipeline_mode<synchronous>, transform_indices = @transform_2, window_bounds = array<i64: 128, 128>}, {pipeline_mode = #tpu.pipeline_mode<synchronous>, transform_indices = @transform_3, window_bounds = array<i64: 128, 128>}, {pipeline_mode = #tpu.pipeline_mode<synchronous>, transform_indices = @transform_4, window_bounds = array<i64: 1, 512>}, {transform_indices = @transform_5, window_bounds = array<i64: 16, 128>}, {transform_indices = @transform_6, window_bounds = array<i64: 16, 1>}]} {
    %c0 = arith.constant 0 : index
    %c0_0 = arith.constant 0 : index
    %0 = vector.load %arg5[%c0, %c0_0] : memref<1x512xf32, #tpu.memory_space<vmem>>, vector<1x128xf32>
    %c0_1 = arith.constant 0 : index
    %c128 = arith.constant 128 : index
    %1 = vector.load %arg5[%c0_1, %c128] : memref<1x512xf32, #tpu.memory_space<vmem>>, vector<1x128xf32>
    %c0_2 = arith.constant 0 : index
    %c256 = arith.constant 256 : index
    %2 = vector.load %arg5[%c0_2, %c256] : memref<1x512xf32, #tpu.memory_space<vmem>>, vector<1x128xf32>
    %c0_3 = arith.constant 0 : index
    %c384 = arith.constant 384 : index
    %3 = vector.load %arg5[%c0_3, %c384] : memref<1x512xf32, #tpu.memory_space<vmem>>, vector<1x128xf32>
    %c0_4 = arith.constant 0 : index
    %c0_5 = arith.constant 0 : index
    %4 = vector.load %arg1[%c0_4, %c0_5] : memref<16x16xf32, #tpu.memory_space<vmem>>, vector<16x16xf32>
    %5 = arith.truncf %4 : vector<16x16xf32> to vector<16x16xbf16>
    %c0_6 = arith.constant 0 : index
    %c0_7 = arith.constant 0 : index
    %6 = vector.load %arg2[%c0_6, %c0_7] : memref<16x128xbf16, #tpu.memory_space<vmem>>, vector<16x128xbf16>
    %cst = arith.constant dense<0.000000e+00> : vector<16x128xf32>
    %7 = tpu.matmul %5, %6, %cst {dimension_numbers = #tpu.dot_dimension_numbers<[1], [0], [0], [1], [0, 0, 1, 1], [], []>} : vector<16x16xbf16>, vector<16x128xbf16>, vector<16x128xf32> -> vector<16x128xf32>
    %8 = vector.broadcast %0 : vector<1x128xf32> to vector<16x128xf32>
    %9 = arith.addf %7, %8 : vector<16x128xf32>
    %cst_8 = arith.constant 0.000000e+00 : f32
    %10 = vector.broadcast %cst_8 : f32 to vector<16x128xf32>
    %11 = arith.maximumf %9, %10 : vector<16x128xf32>
    %12 = arith.truncf %11 : vector<16x128xf32> to vector<16x128xbf16>
    %c0_9 = arith.constant 0 : index
    %c0_10 = arith.constant 0 : index
    %13 = vector.load %arg3[%c0_9, %c0_10] : memref<128x128xbf16, #tpu.memory_space<vmem>>, vector<128x128xbf16>
    %cst_11 = arith.constant dense<0.000000e+00> : vector<16x128xf32>
    %14 = tpu.matmul %12, %13, %cst_11 {dimension_numbers = #tpu.dot_dimension_numbers<[1], [0], [0], [1], [0, 0, 1, 1], [], []>} : vector<16x128xbf16>, vector<128x128xbf16>, vector<16x128xf32> -> vector<16x128xf32>
    %15 = vector.broadcast %1 : vector<1x128xf32> to vector<16x128xf32>
    %16 = arith.addf %14, %15 : vector<16x128xf32>
    %cst_12 = arith.constant 0.000000e+00 : f32
    %17 = vector.broadcast %cst_12 : f32 to vector<16x128xf32>
    %18 = arith.maximumf %16, %17 : vector<16x128xf32>
    %19 = arith.truncf %18 : vector<16x128xf32> to vector<16x128xbf16>
    %c0_13 = arith.constant 0 : index
    %c0_14 = arith.constant 0 : index
    %20 = vector.load %arg4[%c0_13, %c0_14] : memref<128x128xbf16, #tpu.memory_space<vmem>>, vector<128x128xbf16>
    %cst_15 = arith.constant dense<0.000000e+00> : vector<16x128xf32>
    %21 = tpu.matmul %19, %20, %cst_15 {dimension_numbers = #tpu.dot_dimension_numbers<[1], [0], [0], [1], [0, 0, 1, 1], [], []>} : vector<16x128xbf16>, vector<128x128xbf16>, vector<16x128xf32> -> vector<16x128xf32>
    %22 = vector.broadcast %2 : vector<1x128xf32> to vector<16x128xf32>
    %23 = arith.addf %21, %22 : vector<16x128xf32>
    %24 = vector.extract_strided_slice %23 {offsets = [0, 6], sizes = [16, 1], strides = [1, 1]} : vector<16x128xf32> to vector<16x1xf32>
    %c0_16 = arith.constant 0 : index
    %c0_17 = arith.constant 0 : index
    %25 = vector.load %arg7[%c0_16, %c0_17] : memref<16x1xf32, #tpu.memory_space<vmem>>, vector<16x1xf32>
    tpu.vector_store %arg7[%c0_16, %c0_17], %24 {strides = array<i32>} : memref<16x1xf32, #tpu.memory_space<vmem>>, vector<16x1xf32>,
    %26 = vector.broadcast %3 : vector<1x128xf32> to vector<16x128xf32>
    %27 = arith.addf %23, %26 : vector<16x128xf32>
    %cst_18 = arith.constant dense<0xFF800000> : vector<16xf32>
    %28 = vector.multi_reduction <maximumf>, %27, %cst_18 [1] : vector<16x128xf32> to vector<16xf32>
    %29 = vector.shape_cast %28 : vector<16xf32> to vector<16x1xf32>
    %30 = vector.broadcast %29 : vector<16x1xf32> to vector<16x128xf32>
    %31 = arith.subf %27, %30 : vector<16x128xf32>
    %32 = math.exp %31 : vector<16x128xf32>
    %cst_19 = arith.constant dense<0.000000e+00> : vector<16xf32>
    %33 = vector.multi_reduction <add>, %32, %cst_19 [1] : vector<16x128xf32> to vector<16xf32>
    %34 = vector.shape_cast %33 : vector<16xf32> to vector<16x1xf32>
    %35 = vector.broadcast %34 : vector<16x1xf32> to vector<16x128xf32>
    %36 = arith.divf %32, %35 : vector<16x128xf32>
    %37 = arith.truncf %36 : vector<16x128xf32> to vector<16x128xbf16>
    %c0_20 = arith.constant 0 : index
    %c0_21 = arith.constant 0 : index
    %38 = vector.load %arg6[%c0_20, %c0_21] : memref<16x128xbf16, #tpu.memory_space<vmem>>, vector<16x128xbf16>
    tpu.vector_store %arg6[%c0_20, %c0_21], %37 {strides = array<i32>} : memref<16x128xbf16, #tpu.memory_space<vmem>>, vector<16x128xbf16>,
    return
  }
  func.func @transform_0(%arg0: i32) -> (i32, i32) {
    %c0_i32 = arith.constant 0 : i32
    %c0_i32_0 = arith.constant 0 : i32
    return %arg0, %c0_i32 : i32, i32
  }
  func.func @transform_1(%arg0: i32) -> (i32, i32) {
    %c0_i32 = arith.constant 0 : i32
    %c0_i32_0 = arith.constant 0 : i32
    %c0_i32_1 = arith.constant 0 : i32
    return %c0_i32, %c0_i32_0 : i32, i32
  }
  func.func @transform_2(%arg0: i32) -> (i32, i32) {
    %c0_i32 = arith.constant 0 : i32
    %c0_i32_0 = arith.constant 0 : i32
    %c0_i32_1 = arith.constant 0 : i32
    return %c0_i32, %c0_i32_0 : i32, i32
  }
  func.func @transform_3(%arg0: i32) -> (i32, i32) {
    %c0_i32 = arith.constant 0 : i32
    %c0_i32_0 = arith.constant 0 : i32
    %c0_i32_1 = arith.constant 0 : i32
    return %c0_i32, %c0_i32_0 : i32, i32
  }
  func.func @transform_4(%arg0: i32) -> (i32, i32) {
    %c0_i32 = arith.constant 0 : i32
    %c0_i32_0 = arith.constant 0 : i32
    %c0_i32_1 = arith.constant 0 : i32
    return %c0_i32, %c0_i32_0 : i32, i32
  }
  func.func @transform_5(%arg0: i32) -> (i32, i32) {
    %c0_i32 = arith.constant 0 : i32
    %c0_i32_0 = arith.constant 0 : i32
    return %arg0, %c0_i32 : i32, i32
  }
  func.func @transform_6(%arg0: i32) -> (i32, i32) {
    %c0_i32 = arith.constant 0 : i32
    %c0_i32_0 = arith.constant 0 : i32
    return %arg0, %c0_i32 : i32, i32
  }
}

</mosaic_0001>

<llo_original>
// kernel: tpu_custom_call.1
$region0: #{tpu_custom_call.1}
  #allocation0 [shape = 'u32[]', space=smem, size = 0x4, offset = 0x4, fixed_abs, tag = 'smem constant byte address 0x4 - core index']
  #allocation1 [shape = 'u32[144,128]{1,0:T(1,128)}', space=vmem, size = 0x12000, scoped, tag = 'internal scratch']
  %s0 = inlined_call_operand.hbm [shape: f32[16,16], index: 0, kind: input, shape index: {}]
  %s1 = inlined_call_operand.hbm [shape: bf16[16,128], index: 1, kind: input, shape index: {}]
  %s2 = inlined_call_operand.hbm [shape: bf16[128,128], index: 2, kind: input, shape index: {}]
  %s3 = inlined_call_operand.hbm [shape: bf16[128,128], index: 3, kind: input, shape index: {}]
  %s4 = inlined_call_operand.vmem [shape: f32[1,512], index: 4, kind: input, shape index: {}]
  %s5 = inlined_call_operand.hbm [shape: bf16[16,128], index: 5, kind: output, shape index: {0}]
  %s6 = inlined_call_operand.vmem [shape: f32[16,1], index: 6, kind: output, shape index: {1}]
  %7 = xla_tuple %s5, %s6
  %s8 = sld [smem:[#allocation0]]
  $region54: #{tpu_custom_call.1} parent=0
    _
  %s10 = ssub.s32 1, %s8
  %s11 = scalar_select 0, %s10, %s8
  $region1: #{tpu_custom_call.1} parent=0
    #allocation2 [shape = 'u8[8192]{0}', space=vmem, size = 0x2000, scoped, tag = 'input window, operand 0, single buffered']
    #allocation3 [shape = 's32[1]{0}', space=sflag, size = 0x4, scoped, tag = 'scoped memory for tpu_custom_call.1']
    #allocation4 [shape = 's32[1]{0}', space=sflag, size = 0x4, scoped, tag = 'scoped memory for tpu_custom_call.1']
    #allocation5 [shape = 'u8[4096]{0}', space=vmem, size = 0x1000, scoped, tag = 'input window, operand 1, single buffered']
    #allocation6 [shape = 's32[1]{0}', space=sflag, size = 0x4, scoped, tag = 'scoped memory for tpu_custom_call.1']
    #allocation7 [shape = 'u8[32768]{0}', space=vmem, size = 0x8000, scoped, tag = 'input window, operand 2, single buffered']
    #allocation8 [shape = 'u8[32768]{0}', space=vmem, size = 0x8000, scoped, tag = 'input window, operand 3, single buffered']
    #allocation9 [shape = 's32[1]{0}', space=sflag, size = 0x4, scoped, tag = 'scoped memory for tpu_custom_call.1']
    #allocation10 [shape = 'u8[4096]{0}', space=vmem, size = 0x1000, scoped, tag = 'output window, operand 0, single buffered']
    %12 = vsyncpa [#allocation3], 0
    %13 = vsyncpa [#allocation6], 0
    %14 = vsyncpa [#allocation9], 0
    %15 = vsyncpa [#allocation4], 0
    // Predicated region
    $region2: #{tpu_custom_call.1} parent=1 // pred_check
      _
    $region3: #{tpu_custom_call.1} parent=1 // pred_check_branch
      %17 = sbr.rel (0) target = $region5
    $region4: #{tpu_custom_call.1} parent=1 // pred_region
      %s19 = ssub.s32 256, 256
      %20 = vsyncadd [#allocation3], %s19
      %s21 = sshll.u32 [#allocation2], 4
      %s22 = int_to_ptr.vmem [resolvable:$true] %s21
      %27 = dma.hbm_to_vmem [thread:$0]  %s0, 256, %s22, [#allocation3], 128, 128, 8
    $region5: #{tpu_custom_call.1} parent=1 // pred_fallthru
      _
    // Predicated region
    $region6: #{tpu_custom_call.1} parent=1 // pred_check
      _
    $region7: #{tpu_custom_call.1} parent=1 // pred_check_branch
      %29 = sbr.rel (0) target = $region9
    $region8: #{tpu_custom_call.1} parent=1 // pred_region
      %s31 = ssub.s32 128, 128
      %32 = vsyncadd [#allocation6], %s31
      %s33 = sshll.u32 [#allocation5], 4
      %s34 = int_to_ptr.vmem [resolvable:$true] %s33
      %39 = dma.hbm_to_vmem [thread:$0]  %s1, 128, %s34, [#allocation6], 64, 64, 4
    $region9: #{tpu_custom_call.1} parent=1 // pred_fallthru
      _
    // Predicated region
    $region10: #{tpu_custom_call.1} parent=1 // pred_check
      _
    $region11: #{tpu_custom_call.1} parent=1 // pred_check_branch
      %41 = sbr.rel (0) target = $region13
    $region12: #{tpu_custom_call.1} parent=1 // pred_region
      %s43 = ssub.s32 1024, 1024
      %44 = vsyncadd [#allocation6], %s43
      %s45 = sshll.u32 [#allocation7], 4
      %s46 = int_to_ptr.vmem [resolvable:$true] %s45
      %51 = dma.hbm_to_vmem [thread:$0]  %s2, 1024, %s46, [#allocation6], 64, 64, 4
    $region13: #{tpu_custom_call.1} parent=1 // pred_fallthru
      _
    // Predicated region
    $region14: #{tpu_custom_call.1} parent=1 // pred_check
      _
    $region15: #{tpu_custom_call.1} parent=1 // pred_check_branch
      %53 = sbr.rel (0) target = $region17
    $region16: #{tpu_custom_call.1} parent=1 // pred_region
      %s55 = ssub.s32 1024, 1024
      %56 = vsyncadd [#allocation9], %s55
      %s57 = sshll.u32 [#allocation8], 4
      %s58 = int_to_ptr.vmem [resolvable:$true] %s57
      %63 = dma.hbm_to_vmem [thread:$0]  %s3, 1024, %s58, [#allocation9], 64, 64, 4
    $region17: #{tpu_custom_call.1} parent=1 // pred_fallthru
      _
    // Predicated region
    $region18: #{tpu_custom_call.1} parent=1 // pred_check
      _
    $region19: #{tpu_custom_call.1} parent=1 // pred_check_branch
      %65 = sbr.rel (0) target = $region21
    $region20: #{tpu_custom_call.1} parent=1 // pred_region
      _
    $region21: #{tpu_custom_call.1} parent=1 // pred_fallthru
      _
    // Predicated region
    $region22: #{tpu_custom_call.1} parent=1 // pred_check
      _
    $region23: #{tpu_custom_call.1} parent=1 // pred_check_branch
      %67 = sbr.rel (0) target = $region25
    $region24: #{tpu_custom_call.1} parent=1 // pred_region
      %68 = dma.done [#allocation3], 256
    $region25: #{tpu_custom_call.1} parent=1 // pred_fallthru
      _
    // Predicated region
    $region26: #{tpu_custom_call.1} parent=1 // pred_check
      _
    $region27: #{tpu_custom_call.1} parent=1 // pred_check_branch
      %70 = sbr.rel (0) target = $region29
    $region28: #{tpu_custom_call.1} parent=1 // pred_region
      %71 = dma.done [#allocation6], 128
    $region29: #{tpu_custom_call.1} parent=1 // pred_fallthru
      _
    // Predicated region
    $region30: #{tpu_custom_call.1} parent=1 // pred_check
      _
    $region31: #{tpu_custom_call.1} parent=1 // pred_check_branch
      %73 = sbr.rel (0) target = $region33
    $region32: #{tpu_custom_call.1} parent=1 // pred_region
      %74 = dma.done [#allocation6], 1024
    $region33: #{tpu_custom_call.1} parent=1 // pred_fallthru
      _
    // Predicated region
    $region34: #{tpu_custom_call.1} parent=1 // pred_check
      _
    $region35: #{tpu_custom_call.1} parent=1 // pred_check_branch
      %76 = sbr.rel (0) target = $region37
    $region36: #{tpu_custom_call.1} parent=1 // pred_region
      %77 = dma.done [#allocation9], 1024
    $region37: #{tpu_custom_call.1} parent=1 // pred_fallthru
      _
    %v79 = vld [vmem:[%s4] sm:$0x1]
    %v80 = vld [vmem:[%s4 + $0x1] sm:$0x1]
    %v81 = vld [vmem:[%s4 + $0x2] sm:$0x1]
    %v82 = vld [vmem:[%s4 + $0x3] sm:$0x1]
    %v83 = vld [vmem:[#allocation2] sm:$0xff]
    %v84 = vld [vmem:[#allocation2 + $0x8] sm:$0xff]
    %v85 = vpack.c.bf16 %v84, %v83
    %v86 = vld [vmem:[#allocation5] sm:$0xf]
    %v87 = vld [vmem:[#allocation5 + $0x4] sm:$0xf]
    %v89 = vlaneseq
    %v90 = vshrl.u32 %v89, 7
    %v91 = vsub.s32 0, %v90
    %v92 = vrot.slane %v79, %v91
    %v96 = vunpack.c.l.b16 %v86
    %v97 = vunpack.c.l.b16 %v87
    %v98 = vpack.c.b16 %v97, %v96
    %vm100 = vcmask 130048
    %v102 = vsel %vm100, %v85, 0
    %104 = vmatprep.subr.bf16.mxu0 0
    %105 = vmatpush1.bf16.msra.mxu0 %v98
    %106 = vmatprep.subr.bf16.mxu0 0
    %107 = vmatpush1.bf16.msra.mxu0 0
    %108 = vmatprep.subr.bf16.mxu0 0
    %109 = vmatpush1.bf16.msra.mxu0 0
    %110 = vmatprep.subr.bf16.mxu0 0
    %111 = vmatpush1.bf16.msra.mxu0 0
    %112 = vmatprep.subr.bf16.mxu0 0
    %113 = vmatpush1.bf16.msra.mxu0 0
    %114 = vmatprep.subr.bf16.mxu0 0
    %115 = vmatpush1.bf16.msra.mxu0 0
    %116 = vmatprep.subr.bf16.mxu0 0
    %117 = vmatpush1.bf16.msra.mxu0 0
    %118 = vmatprep.subr.bf16.mxu0 0
    %119 = vmatpush1.bf16.msra.mxu0 0
    %120 = vmatprep.subr.bf16.mxu0 0
    %121 = vmatpush1.bf16.msra.mxu0 0
    %122 = vmatprep.subr.bf16.mxu0 0
    %123 = vmatpush1.bf16.msra.mxu0 0
    %124 = vmatprep.subr.bf16.mxu0 0
    %125 = vmatpush1.bf16.msra.mxu0 0
    %126 = vmatprep.subr.bf16.mxu0 0
    %127 = vmatpush1.bf16.msra.mxu0 0
    %128 = vmatprep.subr.bf16.mxu0 0
    %129 = vmatpush1.bf16.msra.mxu0 0
    %130 = vmatprep.subr.bf16.mxu0 0
    %131 = vmatpush1.bf16.msra.mxu0 0
    %132 = vmatprep.subr.bf16.mxu0 0
    %133 = vmatpush1.bf16.msra.mxu0 0
    %134 = vmatprep.subr.bf16.mxu0 0
    %135 = vmatpush1.bf16.msra.mxu0 0
    %136 = vmatprep.mubr.bf16.mxu0 0
    %137 = vmatmul.mubr.bf16.gmra.mrb[0].mxu0 %v102
    %v138 = vpop.f32.mrb[0].mxu0
    %v139 = vadd.f32 %v92, %v138
    %v140 = vpop.f32.mrb[0].mxu0
    %v141 = vpop.f32.mrb[0].mxu0
    %v142 = vadd.f32 %v92, %v141
    %v143 = vpop.f32.mrb[0].mxu0
    %144 = vdwg.mxu0
    %v145 = vmax.f32 %v139, 0.0
    %v146 = vmax.f32 %v142, 0.0
    %v147 = vpack.c.bf16 %v146, %v145
    %v148 = vld [vmem:[#allocation7] sm:$0xf]
    %v149 = vld [vmem:[#allocation7 + $0x4] sm:$0xf]
    %v150 = vld [vmem:[#allocation7 + $0x8] sm:$0xf]
    %v151 = vld [vmem:[#allocation7 + $0xc] sm:$0xf]
    %v152 = vld [vmem:[#allocation7 + $0x10] sm:$0xf]
    %v153 = vld [vmem:[#allocation7 + $0x14] sm:$0xf]
    %v154 = vld [vmem:[#allocation7 + $0x18] sm:$0xf]
    %v155 = vld [vmem:[#allocation7 + $0x1c] sm:$0xf]
    %v156 = vld [vmem:[#allocation7 + $0x20] sm:$0xf]
    %v157 = vld [vmem:[#allocation7 + $0x24] sm:$0xf]
    %v158 = vld [vmem:[#allocation7 + $0x28] sm:$0xf]
    %v159 = vld [vmem:[#allocation7 + $0x2c] sm:$0xf]
    %v160 = vld [vmem:[#allocation7 + $0x30] sm:$0xf]
    %v161 = vld [vmem:[#allocation7 + $0x34] sm:$0xf]
    %v162 = vld [vmem:[#allocation7 + $0x38] sm:$0xf]
    %v163 = vld [vmem:[#allocation7 + $0x3c] sm:$0xf]
    %v165 = vlaneseq
    %v166 = vshrl.u32 %v165, 7
    %v167 = vsub.s32 0, %v166
    %v168 = vrot.slane %v80, %v167
    %v186 = vunpack.c.l.b16 %v148
    %v187 = vunpack.c.l.b16 %v149
    %v188 = vunpack.c.l.b16 %v150
    %v189 = vunpack.c.l.b16 %v151
    %v190 = vunpack.c.l.b16 %v152
    %v191 = vunpack.c.l.b16 %v153
    %v192 = vunpack.c.l.b16 %v154
    %v193 = vunpack.c.l.b16 %v155
    %v194 = vunpack.c.l.b16 %v156
    %v195 = vunpack.c.l.b16 %v157
    %v196 = vunpack.c.l.b16 %v158
    %v197 = vunpack.c.l.b16 %v159
    %v198 = vunpack.c.l.b16 %v160
    %v199 = vunpack.c.l.b16 %v161
    %v200 = vunpack.c.l.b16 %v162
    %v201 = vunpack.c.l.b16 %v163
    %v202 = vpack.c.b16 %v187, %v186
    %v203 = vpack.c.b16 %v189, %v188
    %v204 = vpack.c.b16 %v191, %v190
    %v205 = vpack.c.b16 %v193, %v192
    %v206 = vpack.c.b16 %v195, %v194
    %v207 = vpack.c.b16 %v197, %v196
    %v208 = vpack.c.b16 %v199, %v198
    %v209 = vpack.c.b16 %v201, %v200
    %218 = vmatprep.subr.bf16.mxu0 0
    %219 = vmatpush1.bf16.msra.mxu0 %v202
    %220 = vmatprep.subr.bf16.mxu0 0
    %221 = vmatpush1.bf16.msra.mxu0 %v203
    %222 = vmatprep.subr.bf16.mxu0 0
    %223 = vmatpush1.bf16.msra.mxu0 %v204
    %224 = vmatprep.subr.bf16.mxu0 0
    %225 = vmatpush1.bf16.msra.mxu0 %v205
    %226 = vmatprep.subr.bf16.mxu0 0
    %227 = vmatpush1.bf16.msra.mxu0 %v206
    %228 = vmatprep.subr.bf16.mxu0 0
    %229 = vmatpush1.bf16.msra.mxu0 %v207
    %230 = vmatprep.subr.bf16.mxu0 0
    %231 = vmatpush1.bf16.msra.mxu0 %v208
    %232 = vmatprep.subr.bf16.mxu0 0
    %233 = vmatpush1.bf16.msra.mxu0 %v209
    %234 = vmatprep.subr.bf16.mxu0 0
    %235 = vmatpush1.bf16.msra.mxu0 0
    %236 = vmatprep.subr.bf16.mxu0 0
    %237 = vmatpush1.bf16.msra.mxu0 0
    %238 = vmatprep.subr.bf16.mxu0 0
    %239 = vmatpush1.bf16.msra.mxu0 0
    %240 = vmatprep.subr.bf16.mxu0 0
    %241 = vmatpush1.bf16.msra.mxu0 0
    %242 = vmatprep.subr.bf16.mxu0 0
    %243 = vmatpush1.bf16.msra.mxu0 0
    %244 = vmatprep.subr.bf16.mxu0 0
    %245 = vmatpush1.bf16.msra.mxu0 0
    %246 = vmatprep.subr.bf16.mxu0 0
    %247 = vmatpush1.bf16.msra.mxu0 0
    %248 = vmatprep.subr.bf16.mxu0 0
    %249 = vmatpush1.bf16.msra.mxu0 0
    %250 = vmatprep.mubr.bf16.mxu0 0
    %251 = vmatmul.mubr.bf16.gmra.mrb[0].mxu0 %v147
    %v252 = vpop.f32.mrb[0].mxu0
    %v253 = vadd.f32 %v168, %v252
    %v254 = vpop.f32.mrb[0].mxu0
    %v255 = vpop.f32.mrb[0].mxu0
    %v256 = vadd.f32 %v168, %v255
    %v257 = vpop.f32.mrb[0].mxu0
    %258 = vdwg.mxu0
    %v259 = vmax.f32 %v253, 0.0
    %v260 = vmax.f32 %v256, 0.0
    %v261 = vpack.c.bf16 %v260, %v259
    %v262 = vld [vmem:[#allocation8] sm:$0xf]
    %v263 = vld [vmem:[#allocation8 + $0x4] sm:$0xf]
    %v264 = vld [vmem:[#allocation8 + $0x8] sm:$0xf]
    %v265 = vld [vmem:[#allocation8 + $0xc] sm:$0xf]
    %v266 = vld [vmem:[#allocation8 + $0x10] sm:$0xf]
    %v267 = vld [vmem:[#allocation8 + $0x14] sm:$0xf]
    %v268 = vld [vmem:[#allocation8 + $0x18] sm:$0xf]
    %v269 = vld [vmem:[#allocation8 + $0x1c] sm:$0xf]
    %v270 = vld [vmem:[#allocation8 + $0x20] sm:$0xf]
    %v271 = vld [vmem:[#allocation8 + $0x24] sm:$0xf]
    %v272 = vld [vmem:[#allocation8 + $0x28] sm:$0xf]
    %v273 = vld [vmem:[#allocation8 + $0x2c] sm:$0xf]
    %v274 = vld [vmem:[#allocation8 + $0x30] sm:$0xf]
    %v275 = vld [vmem:[#allocation8 + $0x34] sm:$0xf]
    %v276 = vld [vmem:[#allocation8 + $0x38] sm:$0xf]
    %v277 = vld [vmem:[#allocation8 + $0x3c] sm:$0xf]
    %v279 = vlaneseq
    %v280 = vshrl.u32 %v279, 7
    %v281 = vsub.s32 0, %v280
    %v282 = vrot.slane %v81, %v281
    %v300 = vunpack.c.l.b16 %v262
    %v301 = vunpack.c.l.b16 %v263
    %v302 = vunpack.c.l.b16 %v264
    %v303 = vunpack.c.l.b16 %v265
    %v304 = vunpack.c.l.b16 %v266
    %v305 = vunpack.c.l.b16 %v267
    %v306 = vunpack.c.l.b16 %v268
    %v307 = vunpack.c.l.b16 %v269
    %v308 = vunpack.c.l.b16 %v270
    %v309 = vunpack.c.l.b16 %v271
    %v310 = vunpack.c.l.b16 %v272
    %v311 = vunpack.c.l.b16 %v273
    %v312 = vunpack.c.l.b16 %v274
    %v313 = vunpack.c.l.b16 %v275
    %v314 = vunpack.c.l.b16 %v276
    %v315 = vunpack.c.l.b16 %v277
    %v316 = vpack.c.b16 %v301, %v300
    %v317 = vpack.c.b16 %v303, %v302
    %v318 = vpack.c.b16 %v305, %v304
    %v319 = vpack.c.b16 %v307, %v306
    %v320 = vpack.c.b16 %v309, %v308
    %v321 = vpack.c.b16 %v311, %v310
    %v322 = vpack.c.b16 %v313, %v312
    %v323 = vpack.c.b16 %v315, %v314
    %332 = vmatprep.subr.bf16.mxu0 0
    %333 = vmatpush1.bf16.msra.mxu0 %v316
    %334 = vmatprep.subr.bf16.mxu0 0
    %335 = vmatpush1.bf16.msra.mxu0 %v317
    %336 = vmatprep.subr.bf16.mxu0 0
    %337 = vmatpush1.bf16.msra.mxu0 %v318
    %338 = vmatprep.subr.bf16.mxu0 0
    %339 = vmatpush1.bf16.msra.mxu0 %v319
    %340 = vmatprep.subr.bf16.mxu0 0
    %341 = vmatpush1.bf16.msra.mxu0 %v320
    %342 = vmatprep.subr.bf16.mxu0 0
    %343 = vmatpush1.bf16.msra.mxu0 %v321
    %344 = vmatprep.subr.bf16.mxu0 0
    %345 = vmatpush1.bf16.msra.mxu0 %v322
    %346 = vmatprep.subr.bf16.mxu0 0
    %347 = vmatpush1.bf16.msra.mxu0 %v323
    %348 = vmatprep.subr.bf16.mxu0 0
    %349 = vmatpush1.bf16.msra.mxu0 0
    %350 = vmatprep.subr.bf16.mxu0 0
    %351 = vmatpush1.bf16.msra.mxu0 0
    %352 = vmatprep.subr.bf16.mxu0 0
    %353 = vmatpush1.bf16.msra.mxu0 0
    %354 = vmatprep.subr.bf16.mxu0 0
    %355 = vmatpush1.bf16.msra.mxu0 0
    %356 = vmatprep.subr.bf16.mxu0 0
    %357 = vmatpush1.bf16.msra.mxu0 0
    %358 = vmatprep.subr.bf16.mxu0 0
    %359 = vmatpush1.bf16.msra.mxu0 0
    %360 = vmatprep.subr.bf16.mxu0 0
    %361 = vmatpush1.bf16.msra.mxu0 0
    %362 = vmatprep.subr.bf16.mxu0 0
    %363 = vmatpush1.bf16.msra.mxu0 0
    %364 = vmatprep.mubr.bf16.mxu0 0
    %365 = vmatmul.mubr.bf16.gmra.mrb[0].mxu0 %v261
    %v366 = vpop.f32.mrb[0].mxu0
    %v367 = vadd.f32 %v282, %v366
    %v368 = vpop.f32.mrb[0].mxu0
    %v369 = vpop.f32.mrb[0].mxu0
    %v370 = vadd.f32 %v282, %v369
    %v371 = vpop.f32.mrb[0].mxu0
    %372 = vdwg.mxu0
    %375 = vrot.lane.b32.xlu0 %v367, 122
    %v376 = vpop.permute.xlu0 %375
    %377 = vrot.lane.b32.xlu0 %v370, 122
    %v378 = vpop.permute.xlu0 %377
    %vm381 = vcmask 7168
    %382 = vst.msk [vmem:[%s6] sm:$0xff] %vm381, %v376
    %383 = vst.msk [vmem:[%s6 + $0x8] sm:$0xff] %vm381, %v378
    %v385 = vlaneseq
    %v386 = vshrl.u32 %v385, 7
    %v387 = vsub.s32 0, %v386
    %v388 = vrot.slane %v82, %v387
    %v390 = vadd.f32 %v367, %v388
    %v391 = vadd.f32 %v370, %v388
    %392 = vmax.xlane.f32.xlu0 %v390
    %v393 = vpop.xlane.xlu0 %392
    %394 = vmax.xlane.f32.xlu0 %v391
    %v395 = vpop.xlane.xlu0 %394
    %v396 = vsub.f32 %v390, %v393
    %v397 = vsub.f32 %v391, %v395
    %v398 = vmul.f32 %v396, 1.442695
    %v399 = vpow.pop %v398
    %v400 = vmul.f32 %v397, 1.442695
    %v401 = vpow.pop %v400
    %402 = vadd.xlane.f32.xlu0 %v399
    %v403 = vpop.xlane.xlu0 %402
    %404 = vadd.xlane.f32.xlu0 %v401
    %v405 = vpop.xlane.xlu0 %404
    %v406 = vrcp.pop %v403
    %v407 = vmul.f32 %v399, %v406
    %v408 = vrcp.pop %v405
    %v409 = vmul.f32 %v401, %v408
    %v410 = vpack.c.bf16 %v409, %v407
    %v412 = vunpack.c.l.b16 %v410
    %v413 = vunpack.c.h.b16 %v410
    %v414 = vpack.c.b16 %v412, %v412
    %v415 = vpack.c.b16 %v413, %v413
    %418 = vst [vmem:[#allocation10] sm:$0xf] %v414
    %419 = vst [vmem:[#allocation10 + $0x4] sm:$0xf] %v415
    // Predicated region
    $region38: #{tpu_custom_call.1} parent=1 // pred_check
      _
    $region39: #{tpu_custom_call.1} parent=1 // pred_check_branch
      %421 = sbr.rel (0) target = $region41
    $region40: #{tpu_custom_call.1} parent=1 // pred_region
      %s423 = ssub.s32 128, 128
      %424 = vsyncadd [#allocation4], %s423
      %s425 = sshll.u32 [#allocation10], 4
      %s426 = int_to_ptr.vmem [resolvable:$true] %s425
      %431 = dma.vmem_to_hbm [thread:$0]  %s426, 128, %s5, [#allocation4], 64, 64, 4
    $region41: #{tpu_custom_call.1} parent=1 // pred_fallthru
      _
    // Predicated region
    $region42: #{tpu_custom_call.1} parent=1 // pred_check
      _
    $region43: #{tpu_custom_call.1} parent=1 // pred_check_branch
      %433 = sbr.rel (0) target = $region45
    $region44: #{tpu_custom_call.1} parent=1 // pred_region
      _
    $region45: #{tpu_custom_call.1} parent=1 // pred_fallthru
      _
    // Predicated region
    $region46: #{tpu_custom_call.1} parent=1 // pred_check
      _
    $region47: #{tpu_custom_call.1} parent=1 // pred_check_branch
      %435 = sbr.rel (0) target = $region49
    $region48: #{tpu_custom_call.1} parent=1 // pred_region
      %436 = dma.done [#allocation4], 128
    $region49: #{tpu_custom_call.1} parent=1 // pred_fallthru
      _
    // Predicated region
    $region50: #{tpu_custom_call.1} parent=1 // pred_check
      _
    $region51: #{tpu_custom_call.1} parent=1 // pred_check_branch
      %438 = sbr.rel (0) target = $region53
    $region52: #{tpu_custom_call.1} parent=1 // pred_region
      _
    $region53: #{tpu_custom_call.1} parent=1 // pred_fallthru
      _
    %439 = vsyncpa [#allocation3], 1
    %440 = vsyncpa [#allocation6], 1
    %441 = vsyncpa [#allocation9], 1
    %442 = vsyncpa [#allocation4], 1

</llo_original>
